<compile_context>
chip_gen: v7x
topology: tpu7x:2x2x1
jax: 0.10.0
libtpu: 0.0.40
codegen_flags: <defaults>
</compile_context>

<pallas_src>
import functools

import jax
import jax.numpy as jnp
from jax.experimental import pallas as pl
from jax.experimental.pallas import tpu as pltpu


def _senet_kernel(x_ref, pool_ref, w1_ref, w2_ref, expand_ref, out_ref, *, inv_d):
    """One grid step == one batch tile.

    x_ref     : (TB, F*D)  input slab (native dtype)
    pool_ref  : (F*D, F)   block-diagonal ones (per-field sum), x dtype
    w1_ref    : (F, R)     first linear  (y = z @ w1), f32
    w2_ref    : (R, F)     second linear (y = h @ w2), f32
    expand_ref: (F, F*D)   block-diagonal ones (field -> embedding broadcast), f32
    out_ref   : (TB, F*D)  output slab
    """
    x = x_ref[...]                                                    # (TB, F*D)

    # Squeeze on the MXU: per-field sum then scale by 1/D (f32 accumulation).
    z = jnp.dot(x, pool_ref[...], preferred_element_type=jnp.float32) * inv_d

    # Bottleneck MLP (bias-free), ReLU after each linear.
    h = jnp.maximum(jnp.dot(z, w1_ref[...],
                            preferred_element_type=jnp.float32), 0.0)  # (TB, R)
    w = jnp.maximum(jnp.dot(h, w2_ref[...],
                            preferred_element_type=jnp.float32), 0.0)  # (TB, F)

    # Broadcast each field weight across its D embedding slots on the MXU.
    w_exp = jnp.dot(w, expand_ref[...],
                    preferred_element_type=jnp.float32)                # (TB, F*D)

    # Excitation in the native dtype (no f32 tile materialization).
    out_ref[...] = x * w_exp.astype(out_ref.dtype)


def _vmem_capacity_bytes():
    try:
        return int(pltpu.get_tpu_info().vmem_capacity_bytes)
    except Exception:
        return 64 * 1024 * 1024          # conservative: v7x per-TensorCore VMEM


def _pick_batch_tile(B, F, D, R, itemsize, vmem_cap):
    """Batch tile sized from a generation-aware VMEM budget, >= 4 grid steps."""
    FD = F * D
    budget = min(16 * 1024 * 1024, vmem_cap // 4)
    # Resident constants (double-buffered by the pipeline): pool, expand, w1, w2.
    const_bytes = 2 * (FD * F * itemsize + F * FD * 4 + (F * R + R * F) * 4)
    budget = max(budget - const_bytes, 1 << 20)
    # Per batch-row cost: in+out blocks (double-buffered) + f32 w_exp temp
    # + native-dtype cast of w_exp before the multiply.
    per_row = FD * itemsize * 4 + FD * 4 + FD * itemsize
    tb = max(1, budget // max(1, per_row))
    # Keep >= 4 grid steps so dimension_semantics=("parallel",) can split the
    # axis across v7x's two TensorCores and the pipeline reaches steady state.
    tb = min(tb, max(1, -(-B // 4)))
    tb = min(tb, B)
    sub = max(8, 32 // itemsize)          # sublane packing: f32=8, bf16=16, int8=32
    if tb < B:                            # block dim must be multiple of 8 (or == B)
        tb = max(sub, (tb // sub) * sub)
        tb = min(tb, B)
    return int(tb)


def senet_pallas(x, w1_t, w2_t, *, tb=None):
    """x: (B, F, D); w1_t: (F, R); w2_t: (R, F) -> (B, F, D)."""
    B, F, D = x.shape
    R = w1_t.shape[1]
    FD = F * D
    itemsize = jnp.dtype(x.dtype).itemsize
    vmem_cap = _vmem_capacity_bytes()

    if tb is None:
        tb = _pick_batch_tile(B, F, D, R, itemsize, vmem_cap)
    grid = (pl.cdiv(B, tb),)
    # Padded rows of a partial last block only affect padded output rows
    # (row-wise independent computation), so the result is exact.

    # Constant block-diagonal ones matrices.
    expand = jnp.repeat(jnp.eye(F, dtype=jnp.float32), D, axis=1)      # (F, F*D)
    pool = expand.T.astype(x.dtype)                                    # (F*D, F)
    w1 = w1_t.astype(jnp.float32)
    w2 = w2_t.astype(jnp.float32)

    # Lane-dense 2-D slab layout (free contiguous reshape).
    x2 = x.reshape(B, FD)

    # Right-sized scoped VMEM limit (safe on v7x's 64 MiB VMEM).
    tile_bytes = tb * FD * itemsize * 2 * 2
    const_bytes = 2 * (FD * F * itemsize + F * FD * 4 + (F * R + R * F) * 4)
    temp_bytes = tb * FD * (4 + itemsize)
    need = tile_bytes + const_bytes + temp_bytes + (2 << 20)
    vmem_limit = int(min(max(need, 16 << 20), max(vmem_cap * 3 // 4, 16 << 20)))

    cost = pl.CostEstimate(
        flops=int(2 * B * FD * F          # squeeze matmul
                  + 2 * B * F * R + 2 * B * R * F    # bottleneck MLP
                  + 2 * B * F * FD        # broadcast matmul
                  + B * FD),              # excitation multiply
        transcendentals=0,
        bytes_accessed=int(2 * B * FD * itemsize
                           + FD * F * itemsize + F * FD * 4
                           + (F * R + R * F) * 4),
    )

    kernel = functools.partial(_senet_kernel, inv_d=float(1.0 / D))

    out2 = pl.pallas_call(
        kernel,
        out_shape=jax.ShapeDtypeStruct((B, FD), x.dtype),
        grid_spec=pltpu.PrefetchScalarGridSpec(
            num_scalar_prefetch=0,
            grid=grid,
            in_specs=[
                pl.BlockSpec((tb, FD), lambda i: (i, 0)),   # x batch slab
                pl.BlockSpec((FD, F), lambda i: (0, 0)),    # pool (resident)
                pl.BlockSpec((F, R), lambda i: (0, 0)),     # W1   (resident)
                pl.BlockSpec((R, F), lambda i: (0, 0)),     # W2   (resident)
                pl.BlockSpec((F, FD), lambda i: (0, 0)),    # expand (resident)
            ],
            out_specs=pl.BlockSpec((tb, FD), lambda i: (i, 0)),
        ),
        compiler_params=pltpu.CompilerParams(
            dimension_semantics=("parallel",),
            vmem_limit_bytes=vmem_limit,
        ),
        cost_estimate=cost,
    )(x2, pool, w1, w2, expand)

    return out2.reshape(B, F, D)


def senet_ref(x, w1_t, w2_t):
    """Pure-JAX reference mirroring the PyTorch forward exactly."""
    z = jnp.mean(x, axis=-1)                     # (B, F)
    h = jnp.maximum(z @ w1_t, 0.0)               # (B, R)
    w = jnp.maximum(h @ w2_t, 0.0)               # (B, F)
    return x * w[:, :, None]                     # (B, F, D)


if __name__ == "__main__":
    # Small shapes consistent with the module's (b, f, d) forward.
    batch = 8
    filed_size = 8            # F
    num_dim = 16              # D  -> F*D = 128, lane-dense slab
    reduction_ratio = 3
    reduction_size = max(1, filed_size // reduction_ratio)   # R = 2

    key = jax.random.PRNGKey(0)
    kx, k1, k2 = jax.random.split(key, 3)

    x = jax.random.normal(kx, (batch, filed_size, num_dim), dtype=jnp.float32)
    # Weights stored already transposed (y = z @ W_t), matching nn.Linear(bias=False).
    w1_t = 0.2 * jax.random.normal(k1, (filed_size, reduction_size), jnp.float32)
    w2_t = 0.2 * jax.random.normal(k2, (reduction_size, filed_size), jnp.float32)

    out = senet_pallas(x, w1_t, w2_t)
    out = jax.block_until_ready(out)

    ref = senet_ref(x, w1_t, w2_t)
    assert out.shape == (batch, filed_size, num_dim)
    assert jnp.allclose(out, ref, atol=1e-5, rtol=1e-5), (
        float(jnp.max(jnp.abs(out - ref))))

    print("KERNEL_OK")
</pallas_src>

<mosaic_0001>
module attributes {stable_mosaic.version = 11 : i64} {
  func.func @_senet_kernel(%arg0: i32, %arg1: memref<8x128xf32, #tpu.memory_space<vmem>>, %arg2: memref<128x8xf32, #tpu.memory_space<vmem>>, %arg3: memref<8x2xf32, #tpu.memory_space<vmem>>, %arg4: memref<2x8xf32, #tpu.memory_space<vmem>>, %arg5: memref<8x128xf32, #tpu.memory_space<vmem>>, %arg6: memref<8x128xf32, #tpu.memory_space<vmem>>) attributes {dimension_semantics = [#tpu.dimension_semantics<parallel>], iteration_bounds = array<i64: 1>, scalar_prefetch = 0 : i64, scratch_operands = 0 : i64, tpu.core_type = #tpu.core_type<tc>, window_params = [{transform_indices = @transform_0, window_bounds = array<i64: 8, 128>}, {pipeline_mode = #tpu.pipeline_mode<synchronous>, transform_indices = @transform_1, window_bounds = array<i64: 128, 8>}, {pipeline_mode = #tpu.pipeline_mode<synchronous>, transform_indices = @transform_2, window_bounds = array<i64: 8, 2>}, {pipeline_mode = #tpu.pipeline_mode<synchronous>, transform_indices = @transform_3, window_bounds = array<i64: 2, 8>}, {pipeline_mode = #tpu.pipeline_mode<synchronous>, transform_indices = @transform_4, window_bounds = array<i64: 8, 128>}, {transform_indices = @transform_5, window_bounds = array<i64: 8, 128>}]} {
    %c0 = arith.constant 0 : index
    %c0_0 = arith.constant 0 : index
    %0 = vector.load %arg1[%c0, %c0_0] : memref<8x128xf32, #tpu.memory_space<vmem>>, vector<8x128xf32>
    %c0_1 = arith.constant 0 : index
    %c0_2 = arith.constant 0 : index
    %1 = vector.load %arg2[%c0_1, %c0_2] : memref<128x8xf32, #tpu.memory_space<vmem>>, vector<128x8xf32>
    %cst = arith.constant dense<0.000000e+00> : vector<8x8xf32>
    %2 = tpu.matmul %0, %1, %cst {dimension_numbers = #tpu.dot_dimension_numbers<[1], [0], [0], [1], [0, 0, 1, 1], [], []>} : vector<8x128xf32>, vector<128x8xf32>, vector<8x8xf32> -> vector<8x8xf32>
    %cst_3 = arith.constant 6.250000e-02 : f32
    %3 = vector.broadcast %cst_3 : f32 to vector<8x8xf32>
    %4 = arith.mulf %2, %3 : vector<8x8xf32>
    %c0_4 = arith.constant 0 : index
    %c0_5 = arith.constant 0 : index
    %5 = vector.load %arg3[%c0_4, %c0_5] : memref<8x2xf32, #tpu.memory_space<vmem>>, vector<8x2xf32>
    %cst_6 = arith.constant dense<0.000000e+00> : vector<8x2xf32>
    %6 = tpu.matmul %4, %5, %cst_6 {dimension_numbers = #tpu.dot_dimension_numbers<[1], [0], [0], [1], [0, 0, 1, 1], [], []>} : vector<8x8xf32>, vector<8x2xf32>, vector<8x2xf32> -> vector<8x2xf32>
    %cst_7 = arith.constant 0.000000e+00 : f32
    %7 = vector.broadcast %cst_7 : f32 to vector<8x2xf32>
    %8 = arith.maximumf %6, %7 : vector<8x2xf32>
    %c0_8 = arith.constant 0 : index
    %c0_9 = arith.constant 0 : index
    %9 = vector.load %arg4[%c0_8, %c0_9] : memref<2x8xf32, #tpu.memory_space<vmem>>, vector<2x8xf32>
    %cst_10 = arith.constant dense<0.000000e+00> : vector<8x8xf32>
    %10 = tpu.matmul %8, %9, %cst_10 {dimension_numbers = #tpu.dot_dimension_numbers<[1], [0], [0], [1], [0, 0, 1, 1], [], []>} : vector<8x2xf32>, vector<2x8xf32>, vector<8x8xf32> -> vector<8x8xf32>
    %cst_11 = arith.constant 0.000000e+00 : f32
    %11 = vector.broadcast %cst_11 : f32 to vector<8x8xf32>
    %12 = arith.maximumf %10, %11 : vector<8x8xf32>
    %c0_12 = arith.constant 0 : index
    %c0_13 = arith.constant 0 : index
    %13 = vector.load %arg5[%c0_12, %c0_13] : memref<8x128xf32, #tpu.memory_space<vmem>>, vector<8x128xf32>
    %cst_14 = arith.constant dense<0.000000e+00> : vector<8x128xf32>
    %14 = tpu.matmul %12, %13, %cst_14 {dimension_numbers = #tpu.dot_dimension_numbers<[1], [0], [0], [1], [0, 0, 1, 1], [], []>} : vector<8x8xf32>, vector<8x128xf32>, vector<8x128xf32> -> vector<8x128xf32>
    %15 = arith.mulf %0, %14 : vector<8x128xf32>
    %c0_15 = arith.constant 0 : index
    %c0_16 = arith.constant 0 : index
    %16 = vector.load %arg6[%c0_15, %c0_16] : memref<8x128xf32, #tpu.memory_space<vmem>>, vector<8x128xf32>
    tpu.vector_store %arg6[%c0_15, %c0_16], %15 {strides = array<i32>} : memref<8x128xf32, #tpu.memory_space<vmem>>, vector<8x128xf32>,
    return
  }
  func.func @transform_0(%arg0: i32) -> (i32, i32) {
    %c0_i32 = arith.constant 0 : i32
    %c0_i32_0 = arith.constant 0 : i32
    return %arg0, %c0_i32 : i32, i32
  }
  func.func @transform_1(%arg0: i32) -> (i32, i32) {
    %c0_i32 = arith.constant 0 : i32
    %c0_i32_0 = arith.constant 0 : i32
    %c0_i32_1 = arith.constant 0 : i32
    return %c0_i32, %c0_i32_0 : i32, i32
  }
  func.func @transform_2(%arg0: i32) -> (i32, i32) {
    %c0_i32 = arith.constant 0 : i32
    %c0_i32_0 = arith.constant 0 : i32
    %c0_i32_1 = arith.constant 0 : i32
    return %c0_i32, %c0_i32_0 : i32, i32
  }
  func.func @transform_3(%arg0: i32) -> (i32, i32) {
    %c0_i32 = arith.constant 0 : i32
    %c0_i32_0 = arith.constant 0 : i32
    %c0_i32_1 = arith.constant 0 : i32
    return %c0_i32, %c0_i32_0 : i32, i32
  }
  func.func @transform_4(%arg0: i32) -> (i32, i32) {
    %c0_i32 = arith.constant 0 : i32
    %c0_i32_0 = arith.constant 0 : i32
    %c0_i32_1 = arith.constant 0 : i32
    return %c0_i32, %c0_i32_0 : i32, i32
  }
  func.func @transform_5(%arg0: i32) -> (i32, i32) {
    %c0_i32 = arith.constant 0 : i32
    %c0_i32_0 = arith.constant 0 : i32
    return %arg0, %c0_i32 : i32, i32
  }
}

</mosaic_0001>

<llo_original>
// kernel: tpu_custom_call.1
$region0: #{tpu_custom_call.1}
  #allocation0 [shape = 'u32[]', space=smem, size = 0x4, offset = 0x4, fixed_abs, tag = 'smem constant byte address 0x4 - core index']
  #allocation1 [shape = 'u32[144,128]{1,0:T(1,128)}', space=vmem, size = 0x12000, scoped, tag = 'internal scratch']
  %s0 = inlined_call_operand.vmem [shape: f32[8,128], index: 0, kind: input, shape index: {}]
  %s1 = inlined_call_operand.vmem [shape: f32[128,8], index: 1, kind: input, shape index: {}]
  %s2 = inlined_call_operand.vmem [shape: f32[8,2], index: 2, kind: input, shape index: {}]
  %s3 = inlined_call_operand.vmem [shape: f32[2,8], index: 3, kind: input, shape index: {}]
  %s4 = inlined_call_operand.vmem [shape: f32[8,128], index: 4, kind: input, shape index: {}]
  %s5 = inlined_call_operand.hbm [shape: f32[8,128], index: 5, kind: output, shape index: {}]
  %s6 = sld [smem:[#allocation0]]
  $region30: #{tpu_custom_call.1} parent=0
    _
  %s8 = ssub.s32 1, %s6
  %s9 = scalar_select 0, %s8, %s6
  $region1: #{tpu_custom_call.1} parent=0
    #allocation2 [shape = 'u8[4096]{0}', space=vmem, size = 0x1000, scoped, tag = 'output window, operand 0, single buffered']
    #allocation3 [shape = 's32[1]{0}', space=sflag, size = 0x4, scoped, tag = 'scoped memory for tpu_custom_call.1']
    %10 = vsyncpa [#allocation3], 0
    // Predicated region
    $region2: #{tpu_custom_call.1} parent=1 // pred_check
      _
    $region3: #{tpu_custom_call.1} parent=1 // pred_check_branch
      %12 = sbr.rel (0) target = $region5
    $region4: #{tpu_custom_call.1} parent=1 // pred_region
      _
    $region5: #{tpu_custom_call.1} parent=1 // pred_fallthru
      _
    // Predicated region
    $region6: #{tpu_custom_call.1} parent=1 // pred_check
      _
    $region7: #{tpu_custom_call.1} parent=1 // pred_check_branch
      %14 = sbr.rel (0) target = $region9
    $region8: #{tpu_custom_call.1} parent=1 // pred_region
      _
    $region9: #{tpu_custom_call.1} parent=1 // pred_fallthru
      _
    // Predicated region
    $region10: #{tpu_custom_call.1} parent=1 // pred_check
      _
    $region11: #{tpu_custom_call.1} parent=1 // pred_check_branch
      %16 = sbr.rel (0) target = $region13
    $region12: #{tpu_custom_call.1} parent=1 // pred_region
      _
    $region13: #{tpu_custom_call.1} parent=1 // pred_fallthru
      _
    // Predicated region
    $region14: #{tpu_custom_call.1} parent=1 // pred_check
      _
    $region15: #{tpu_custom_call.1} parent=1 // pred_check_branch
      %18 = sbr.rel (0) target = $region17
    $region16: #{tpu_custom_call.1} parent=1 // pred_region
      _
    $region17: #{tpu_custom_call.1} parent=1 // pred_fallthru
      _
    // Predicated region
    $region18: #{tpu_custom_call.1} parent=1 // pred_check
      _
    $region19: #{tpu_custom_call.1} parent=1 // pred_check_branch
      %20 = sbr.rel (0) target = $region21
    $region20: #{tpu_custom_call.1} parent=1 // pred_region
      _
    $region21: #{tpu_custom_call.1} parent=1 // pred_fallthru
      _
    %v21 = vld [vmem:[%s0] sm:$0xff]
    %v22 = vld [vmem:[%s1] sm:$0xff]
    %v23 = vld [vmem:[%s1 + $0x8] sm:$0xff]
    %v24 = vld [vmem:[%s1 + $0x10] sm:$0xff]
    %v25 = vld [vmem:[%s1 + $0x18] sm:$0xff]
    %v26 = vld [vmem:[%s1 + $0x20] sm:$0xff]
    %v27 = vld [vmem:[%s1 + $0x28] sm:$0xff]
    %v28 = vld [vmem:[%s1 + $0x30] sm:$0xff]
    %v29 = vld [vmem:[%s1 + $0x38] sm:$0xff]
    %v30 = vld [vmem:[%s1 + $0x40] sm:$0xff]
    %v31 = vld [vmem:[%s1 + $0x48] sm:$0xff]
    %v32 = vld [vmem:[%s1 + $0x50] sm:$0xff]
    %v33 = vld [vmem:[%s1 + $0x58] sm:$0xff]
    %v34 = vld [vmem:[%s1 + $0x60] sm:$0xff]
    %v35 = vld [vmem:[%s1 + $0x68] sm:$0xff]
    %v36 = vld [vmem:[%s1 + $0x70] sm:$0xff]
    %v37 = vld [vmem:[%s1 + $0x78] sm:$0xff]
    %38 = vmatprep.subr.mxu0 0.0
    %39 = vmatpush1.msra.mxu0 %v22
    %40 = vmatprep.subr.mxu0 0.0
    %41 = vmatpush1.msra.mxu0 %v23
    %42 = vmatprep.subr.mxu0 0.0
    %43 = vmatpush1.msra.mxu0 %v24
    %44 = vmatprep.subr.mxu0 0.0
    %45 = vmatpush1.msra.mxu0 %v25
    %46 = vmatprep.subr.mxu0 0.0
    %47 = vmatpush1.msra.mxu0 %v26
    %48 = vmatprep.subr.mxu0 0.0
    %49 = vmatpush1.msra.mxu0 %v27
    %50 = vmatprep.subr.mxu0 0.0
    %51 = vmatpush1.msra.mxu0 %v28
    %52 = vmatprep.subr.mxu0 0.0
    %53 = vmatpush1.msra.mxu0 %v29
    %54 = vmatprep.subr.mxu0 0.0
    %55 = vmatpush1.msra.mxu0 %v30
    %56 = vmatprep.subr.mxu0 0.0
    %57 = vmatpush1.msra.mxu0 %v31
    %58 = vmatprep.subr.mxu0 0.0
    %59 = vmatpush1.msra.mxu0 %v32
    %60 = vmatprep.subr.mxu0 0.0
    %61 = vmatpush1.msra.mxu0 %v33
    %62 = vmatprep.subr.mxu0 0.0
    %63 = vmatpush1.msra.mxu0 %v34
    %64 = vmatprep.subr.mxu0 0.0
    %65 = vmatpush1.msra.mxu0 %v35
    %66 = vmatprep.subr.mxu0 0.0
    %67 = vmatpush1.msra.mxu0 %v36
    %68 = vmatprep.subr.mxu0 0.0
    %69 = vmatpush1.msra.mxu0 %v37
    %70 = vmatprep.subr.mxu0 0.0
    %71 = vmatpush1.msra.mxu0 0.0
    %72 = vmatprep.subr.mxu0 0.0
    %73 = vmatpush1.msra.mxu0 0.0
    %74 = vmatprep.subr.mxu0 0.0
    %75 = vmatpush1.msra.mxu0 0.0
    %76 = vmatprep.subr.mxu0 0.0
    %77 = vmatpush1.msra.mxu0 0.0
    %78 = vmatprep.subr.mxu0 0.0
    %79 = vmatpush1.msra.mxu0 0.0
    %80 = vmatprep.subr.mxu0 0.0
    %81 = vmatpush1.msra.mxu0 0.0
    %82 = vmatprep.subr.mxu0 0.0
    %83 = vmatpush1.msra.mxu0 0.0
    %84 = vmatprep.subr.mxu0 0.0
    %85 = vmatpush1.msra.mxu0 0.0
    %86 = vmatprep.subr.mxu0 0.0
    %87 = vmatpush1.msra.mxu0 0.0
    %88 = vmatprep.subr.mxu0 0.0
    %89 = vmatpush1.msra.mxu0 0.0
    %90 = vmatprep.subr.mxu0 0.0
    %91 = vmatpush1.msra.mxu0 0.0
    %92 = vmatprep.subr.mxu0 0.0
    %93 = vmatpush1.msra.mxu0 0.0
    %94 = vmatprep.subr.mxu0 0.0
    %95 = vmatpush1.msra.mxu0 0.0
    %96 = vmatprep.subr.mxu0 0.0
    %97 = vmatpush1.msra.mxu0 0.0
    %98 = vmatprep.subr.mxu0 0.0
    %99 = vmatpush1.msra.mxu0 0.0
    %100 = vmatprep.subr.mxu0 0.0
    %101 = vmatpush1.msra.mxu0 0.0
    %102 = vmatprep.mubr.f32.mxu0 0.0
    %103 = vmatmul.mubr.f32.gmra.mrb[0].mxu0 %v21
    %v104 = vpop.f32.mrb[0].mxu0
    %v105 = vadd.f32 0.0, %v104
    %v106 = vpop.f32.mrb[0].mxu0
    %107 = vdwg.mxu0
    %v108 = vmul.f32 %v105, 0.0625
    %v109 = vld [vmem:[%s2] sm:$0xff]
    %vm110 = vcmask 64512
    %v112 = vsel %vm110, %v108, 0
    %114 = vmatprep.subr.mxu0 0.0
    %115 = vmatpush1.msra.mxu0 %v109
    %116 = vmatprep.subr.mxu0 0.0
    %117 = vmatpush1.msra.mxu0 0.0
    %118 = vmatprep.subr.mxu0 0.0
    %119 = vmatpush1.msra.mxu0 0.0
    %120 = vmatprep.subr.mxu0 0.0
    %121 = vmatpush1.msra.mxu0 0.0
    %122 = vmatprep.subr.mxu0 0.0
    %123 = vmatpush1.msra.mxu0 0.0
    %124 = vmatprep.subr.mxu0 0.0
    %125 = vmatpush1.msra.mxu0 0.0
    %126 = vmatprep.subr.mxu0 0.0
    %127 = vmatpush1.msra.mxu0 0.0
    %128 = vmatprep.subr.mxu0 0.0
    %129 = vmatpush1.msra.mxu0 0.0
    %130 = vmatprep.subr.mxu0 0.0
    %131 = vmatpush1.msra.mxu0 0.0
    %132 = vmatprep.subr.mxu0 0.0
    %133 = vmatpush1.msra.mxu0 0.0
    %134 = vmatprep.subr.mxu0 0.0
    %135 = vmatpush1.msra.mxu0 0.0
    %136 = vmatprep.subr.mxu0 0.0
    %137 = vmatpush1.msra.mxu0 0.0
    %138 = vmatprep.subr.mxu0 0.0
    %139 = vmatpush1.msra.mxu0 0.0
    %140 = vmatprep.subr.mxu0 0.0
    %141 = vmatpush1.msra.mxu0 0.0
    %142 = vmatprep.subr.mxu0 0.0
    %143 = vmatpush1.msra.mxu0 0.0
    %144 = vmatprep.subr.mxu0 0.0
    %145 = vmatpush1.msra.mxu0 0.0
    %146 = vmatprep.subr.mxu0 0.0
    %147 = vmatpush1.msra.mxu0 0.0
    %148 = vmatprep.subr.mxu0 0.0
    %149 = vmatpush1.msra.mxu0 0.0
    %150 = vmatprep.subr.mxu0 0.0
    %151 = vmatpush1.msra.mxu0 0.0
    %152 = vmatprep.subr.mxu0 0.0
    %153 = vmatpush1.msra.mxu0 0.0
    %154 = vmatprep.subr.mxu0 0.0
    %155 = vmatpush1.msra.mxu0 0.0
    %156 = vmatprep.subr.mxu0 0.0
    %157 = vmatpush1.msra.mxu0 0.0
    %158 = vmatprep.subr.mxu0 0.0
    %159 = vmatpush1.msra.mxu0 0.0
    %160 = vmatprep.subr.mxu0 0.0
    %161 = vmatpush1.msra.mxu0 0.0
    %162 = vmatprep.subr.mxu0 0.0
    %163 = vmatpush1.msra.mxu0 0.0
    %164 = vmatprep.subr.mxu0 0.0
    %165 = vmatpush1.msra.mxu0 0.0
    %166 = vmatprep.subr.mxu0 0.0
    %167 = vmatpush1.msra.mxu0 0.0
    %168 = vmatprep.subr.mxu0 0.0
    %169 = vmatpush1.msra.mxu0 0.0
    %170 = vmatprep.subr.mxu0 0.0
    %171 = vmatpush1.msra.mxu0 0.0
    %172 = vmatprep.subr.mxu0 0.0
    %173 = vmatpush1.msra.mxu0 0.0
    %174 = vmatprep.subr.mxu0 0.0
    %175 = vmatpush1.msra.mxu0 0.0
    %176 = vmatprep.subr.mxu0 0.0
    %177 = vmatpush1.msra.mxu0 0.0
    %178 = vmatprep.mubr.f32.mxu0 0.0
    %179 = vmatmul.mubr.f32.gmra.mrb[0].mxu0 %v112
    %v180 = vpop.f32.mrb[0].mxu0
    %v181 = vadd.f32 0.0, %v180
    %v182 = vpop.f32.mrb[0].mxu0
    %183 = vdwg.mxu0
    %v184 = vmax.f32 %v181, 0.0
    %v185 = vld [vmem:[%s3] sm:$0x3]
    %vm186 = vcmask 15360
    %v188 = vsel %vm186, %v184, 0
    %vm190 = vcmask 1041408
    %v192 = vsel %vm190, %v185, 0
    %194 = vmatprep.subr.mxu0 0.0
    %195 = vmatpush1.msra.mxu0 %v192
    %196 = vmatprep.subr.mxu0 0.0
    %197 = vmatpush1.msra.mxu0 0.0
    %198 = vmatprep.subr.mxu0 0.0
    %199 = vmatpush1.msra.mxu0 0.0
    %200 = vmatprep.subr.mxu0 0.0
    %201 = vmatpush1.msra.mxu0 0.0
    %202 = vmatprep.subr.mxu0 0.0
    %203 = vmatpush1.msra.mxu0 0.0
    %204 = vmatprep.subr.mxu0 0.0
    %205 = vmatpush1.msra.mxu0 0.0
    %206 = vmatprep.subr.mxu0 0.0
    %207 = vmatpush1.msra.mxu0 0.0
    %208 = vmatprep.subr.mxu0 0.0
    %209 = vmatpush1.msra.mxu0 0.0
    %210 = vmatprep.subr.mxu0 0.0
    %211 = vmatpush1.msra.mxu0 0.0
    %212 = vmatprep.subr.mxu0 0.0
    %213 = vmatpush1.msra.mxu0 0.0
    %214 = vmatprep.subr.mxu0 0.0
    %215 = vmatpush1.msra.mxu0 0.0
    %216 = vmatprep.subr.mxu0 0.0
    %217 = vmatpush1.msra.mxu0 0.0
    %218 = vmatprep.subr.mxu0 0.0
    %219 = vmatpush1.msra.mxu0 0.0
    %220 = vmatprep.subr.mxu0 0.0
    %221 = vmatpush1.msra.mxu0 0.0
    %222 = vmatprep.subr.mxu0 0.0
    %223 = vmatpush1.msra.mxu0 0.0
    %224 = vmatprep.subr.mxu0 0.0
    %225 = vmatpush1.msra.mxu0 0.0
    %226 = vmatprep.subr.mxu0 0.0
    %227 = vmatpush1.msra.mxu0 0.0
    %228 = vmatprep.subr.mxu0 0.0
    %229 = vmatpush1.msra.mxu0 0.0
    %230 = vmatprep.subr.mxu0 0.0
    %231 = vmatpush1.msra.mxu0 0.0
    %232 = vmatprep.subr.mxu0 0.0
    %233 = vmatpush1.msra.mxu0 0.0
    %234 = vmatprep.subr.mxu0 0.0
    %235 = vmatpush1.msra.mxu0 0.0
    %236 = vmatprep.subr.mxu0 0.0
    %237 = vmatpush1.msra.mxu0 0.0
    %238 = vmatprep.subr.mxu0 0.0
    %239 = vmatpush1.msra.mxu0 0.0
    %240 = vmatprep.subr.mxu0 0.0
    %241 = vmatpush1.msra.mxu0 0.0
    %242 = vmatprep.subr.mxu0 0.0
    %243 = vmatpush1.msra.mxu0 0.0
    %244 = vmatprep.subr.mxu0 0.0
    %245 = vmatpush1.msra.mxu0 0.0
    %246 = vmatprep.subr.mxu0 0.0
    %247 = vmatpush1.msra.mxu0 0.0
    %248 = vmatprep.subr.mxu0 0.0
    %249 = vmatpush1.msra.mxu0 0.0
    %250 = vmatprep.subr.mxu0 0.0
    %251 = vmatpush1.msra.mxu0 0.0
    %252 = vmatprep.subr.mxu0 0.0
    %253 = vmatpush1.msra.mxu0 0.0
    %254 = vmatprep.subr.mxu0 0.0
    %255 = vmatpush1.msra.mxu0 0.0
    %256 = vmatprep.subr.mxu0 0.0
    %257 = vmatpush1.msra.mxu0 0.0
    %258 = vmatprep.mubr.f32.mxu0 0.0
    %259 = vmatmul.mubr.f32.gmra.mrb[0].mxu0 %v188
    %v260 = vpop.f32.mrb[0].mxu0
    %v261 = vadd.f32 0.0, %v260
    %v262 = vpop.f32.mrb[0].mxu0
    %263 = vdwg.mxu0
    %v264 = vmax.f32 %v261, 0.0
    %v265 = vld [vmem:[%s4] sm:$0xff]
    %v267 = vsel %vm110, %v264, 0
    %269 = vmatprep.subr.mxu0 0.0
    %270 = vmatpush1.msra.mxu0 %v265
    %271 = vmatprep.subr.mxu0 0.0
    %272 = vmatpush1.msra.mxu0 0.0
    %273 = vmatprep.subr.mxu0 0.0
    %274 = vmatpush1.msra.mxu0 0.0
    %275 = vmatprep.subr.mxu0 0.0
    %276 = vmatpush1.msra.mxu0 0.0
    %277 = vmatprep.subr.mxu0 0.0
    %278 = vmatpush1.msra.mxu0 0.0
    %279 = vmatprep.subr.mxu0 0.0
    %280 = vmatpush1.msra.mxu0 0.0
    %281 = vmatprep.subr.mxu0 0.0
    %282 = vmatpush1.msra.mxu0 0.0
    %283 = vmatprep.subr.mxu0 0.0
    %284 = vmatpush1.msra.mxu0 0.0
    %285 = vmatprep.subr.mxu0 0.0
    %286 = vmatpush1.msra.mxu0 0.0
    %287 = vmatprep.subr.mxu0 0.0
    %288 = vmatpush1.msra.mxu0 0.0
    %289 = vmatprep.subr.mxu0 0.0
    %290 = vmatpush1.msra.mxu0 0.0
    %291 = vmatprep.subr.mxu0 0.0
    %292 = vmatpush1.msra.mxu0 0.0
    %293 = vmatprep.subr.mxu0 0.0
    %294 = vmatpush1.msra.mxu0 0.0
    %295 = vmatprep.subr.mxu0 0.0
    %296 = vmatpush1.msra.mxu0 0.0
    %297 = vmatprep.subr.mxu0 0.0
    %298 = vmatpush1.msra.mxu0 0.0
    %299 = vmatprep.subr.mxu0 0.0
    %300 = vmatpush1.msra.mxu0 0.0
    %301 = vmatprep.subr.mxu0 0.0
    %302 = vmatpush1.msra.mxu0 0.0
    %303 = vmatprep.subr.mxu0 0.0
    %304 = vmatpush1.msra.mxu0 0.0
    %305 = vmatprep.subr.mxu0 0.0
    %306 = vmatpush1.msra.mxu0 0.0
    %307 = vmatprep.subr.mxu0 0.0
    %308 = vmatpush1.msra.mxu0 0.0
    %309 = vmatprep.subr.mxu0 0.0
    %310 = vmatpush1.msra.mxu0 0.0
    %311 = vmatprep.subr.mxu0 0.0
    %312 = vmatpush1.msra.mxu0 0.0
    %313 = vmatprep.subr.mxu0 0.0
    %314 = vmatpush1.msra.mxu0 0.0
    %315 = vmatprep.subr.mxu0 0.0
    %316 = vmatpush1.msra.mxu0 0.0
    %317 = vmatprep.subr.mxu0 0.0
    %318 = vmatpush1.msra.mxu0 0.0
    %319 = vmatprep.subr.mxu0 0.0
    %320 = vmatpush1.msra.mxu0 0.0
    %321 = vmatprep.subr.mxu0 0.0
    %322 = vmatpush1.msra.mxu0 0.0
    %323 = vmatprep.subr.mxu0 0.0
    %324 = vmatpush1.msra.mxu0 0.0
    %325 = vmatprep.subr.mxu0 0.0
    %326 = vmatpush1.msra.mxu0 0.0
    %327 = vmatprep.subr.mxu0 0.0
    %328 = vmatpush1.msra.mxu0 0.0
    %329 = vmatprep.subr.mxu0 0.0
    %330 = vmatpush1.msra.mxu0 0.0
    %331 = vmatprep.subr.mxu0 0.0
    %332 = vmatpush1.msra.mxu0 0.0
    %333 = vmatprep.mubr.f32.mxu0 0.0
    %334 = vmatmul.mubr.f32.gmra.mrb[0].mxu0 %v267
    %v335 = vpop.f32.mrb[0].mxu0
    %v336 = vadd.f32 0.0, %v335
    %v337 = vpop.f32.mrb[0].mxu0
    %338 = vdwg.mxu0
    %v339 = vmul.f32 %v21, %v336
    %340 = vst [vmem:[#allocation2] sm:$0xff] %v339
    // Predicated region
    $region22: #{tpu_custom_call.1} parent=1 // pred_check
      _
    $region23: #{tpu_custom_call.1} parent=1 // pred_check_branch
      %342 = sbr.rel (0) target = $region25
    $region24: #{tpu_custom_call.1} parent=1 // pred_region
      %s344 = ssub.s32 128, 128
      %345 = vsyncadd [#allocation3], %s344
      %s347 = sshll.u32 [#allocation2], 4
      %s348 = int_to_ptr.vmem [resolvable:$true] %s347
      %350 = dma.vmem_to_hbm [thread:$0]  %s348, 128, %s5, [#allocation3]
    $region25: #{tpu_custom_call.1} parent=1 // pred_fallthru
      _
    // Predicated region
    $region26: #{tpu_custom_call.1} parent=1 // pred_check
      _
    $region27: #{tpu_custom_call.1} parent=1 // pred_check_branch
      %352 = sbr.rel (0) target = $region29
    $region28: #{tpu_custom_call.1} parent=1 // pred_region
      %353 = dma.done [#allocation3], 128
    $region29: #{tpu_custom_call.1} parent=1 // pred_fallthru
      _
    %354 = vsyncpa [#allocation3], 1

</llo_original>
